<compile_context>
chip_gen: v7x
topology: tpu7x:2x2x1
jax: 0.10.0
libtpu: 0.0.40
codegen_flags: <defaults>
</compile_context>

<pallas_src>
import jax
import jax.numpy as jnp
from jax.experimental import pallas as pl
from jax.experimental.pallas import tpu as pltpu


def _round_up(v, m):
    return ((v + m - 1) // m) * m


def _pick_k(B, rows, p_pad, e_pad, out_bytes, budget_bytes=12 * 1024 * 1024):
    """Pick k = batch elements per grid step (k | B), VMEM-budgeted.

    Targets ~512-1024 rows per step (amortizes the ~0.35us/step overhead) while
    keeping the double-buffered working set under a budget that fits even v5e's
    16 MiB scoped-VMEM default, and prefers an even step count so v7x's two
    TensorCores get balanced work.
    """
    divisors = [d for d in range(1, B + 1) if B % d == 0]

    def vmem_bytes(k):
        patches = 2 * k * rows * p_pad * 2           # bf16 input tile, double-buffered
        out = 2 * k * rows * e_pad * out_bytes       # output tile, double-buffered
        w = 2 * p_pad * e_pad * 2                    # invariant weight (still 2-buffered)
        posb = 2 * rows * e_pad * 4
        par = 2 * 8 * e_pad * 4
        return patches + out + w + posb + par

    feasible = [d for d in divisors if vmem_bytes(d) <= budget_bytes] or [1]

    def score(k):
        steps = B // k
        return (
            0 if steps >= 2 else 1,        # keep >=2 pipelined grid steps
            0 if steps % 2 == 0 else 1,    # even split across v7x's 2 TensorCores
            abs(k * rows - 768),           # aim for ~512-1024 rows per step
        )

    return min(feasible, key=score)


def _make_embed_kernel(k, rows, E, E_pad, eps):
    inv_e = 1.0 / float(E)
    pad_cols = float(E_pad - E)

    def kernel(patches_ref, w_ref, posb_ref, params_ref, out_ref):
        # patches_ref : (k, rows, P_pad) bf16 — row 0 per batch elem is zeros (cls slot)
        # w_ref       : (P_pad, E_pad)   bf16 — zero-padded projection weight (invariant)
        # posb_ref    : (rows, E_pad)    f32  — row0 = cls+pos[0]; rows1.. = pos[1:]+bias
        # params_ref  : (8, E_pad)       f32  — row0 = gamma, row1 = beta (0 in pad lanes)
        # out_ref     : (k, rows, E_pad)
        w = w_ref[...]
        posb = posb_ref[...]
        gamma = params_ref[pl.ds(0, 1), :]
        beta = params_ref[pl.ds(1, 1), :]

        for i in range(k):                                   # k is small & static
            h = jnp.dot(patches_ref[i], w,
                        preferred_element_type=jnp.float32)  # MXU, f32 accumulation
            h = h + posb                                     # bias / pos / cls pre-folded

            # LayerNorm over the true E lanes; padded lanes of h are exactly 0.
            mean = jnp.sum(h, axis=-1, keepdims=True) * inv_e
            xc = h - mean
            sq = jnp.sum(xc * xc, axis=-1, keepdims=True)
            if E_pad > E:
                # remove the padded lanes' (-mean)^2 contribution in closed form
                sq = sq - pad_cols * (mean * mean)
            inv = jax.lax.rsqrt(sq * inv_e + eps)            # EUP (free slot)
            # gamma/beta are 0 in padded lanes -> padded output lanes are exact 0.
            out_ref[i] = (xc * inv * gamma + beta).astype(out_ref.dtype)

    return kernel


def embed_layer(x, w, b, cls_token, pos_embedding, gamma, beta, patch_size,
                *, out_dtype=jnp.float32, keep_padding=True, eps=1e-5):
    """x: (B, C, H, W) float32 (NCHW, as in PyTorch).

    Returns (B, N+1, E_pad) with exact-zero padded lanes when keep_padding=True
    (recommended: avoids an extra HBM pass), else (B, N+1, E).
    """
    B, C, H, W = x.shape
    p = patch_size
    Hp, Wp = H // p, W // p
    N = Hp * Wp
    rows = N + 1
    P = C * p * p
    P_pad = _round_up(P, 128)
    E = w.shape[1]
    E_pad = _round_up(E, 128)

    # --- patch extraction (kept in XLA; see TODO).  Cast to bf16 FIRST, pad the
    # contraction dim to 128 alignment, and prepend one zero row per batch elem
    # (the cls slot) so the kernel emits the final sequence layout directly. ---
    patches = (x.astype(jnp.bfloat16)
                 .reshape(B, C, Hp, p, Wp, p)
                 .transpose(0, 2, 4, 1, 3, 5)
                 .reshape(B, N, P))
    patches = jnp.pad(patches, ((0, 0), (1, 0), (0, P_pad - P)))   # (B, rows, P_pad)

    def pad_e(a):
        if E_pad == E:
            return a
        return jnp.pad(a, [(0, 0)] * (a.ndim - 1) + [(0, E_pad - E)])

    w_p = pad_e(jnp.pad(w, ((0, P_pad - P), (0, 0)))).astype(jnp.bfloat16)

    pos = pos_embedding.reshape(rows, E).astype(jnp.float32)
    posb = jnp.concatenate(
        [cls_token.reshape(1, E) + pos[0:1],          # cls row: no projection bias
         pos[1:] + b[None, :]], axis=0)               # patch rows: pos + proj bias
    posb = pad_e(posb)                                # (rows, E_pad) f32

    params = jnp.zeros((8, E_pad), jnp.float32)
    params = params.at[0, :E].set(gamma)
    params = params.at[1, :E].set(beta)

    out_bytes = jnp.dtype(out_dtype).itemsize
    k = _pick_k(B, rows, P_pad, E_pad, out_bytes)
    num_steps = B // k

    kernel = _make_embed_kernel(k, rows, E, E_pad, eps)

    flops = 2 * B * rows * P_pad * E_pad
    bytes_accessed = (patches.size * 2 + w_p.size * 2 + posb.size * 4 +
                      params.size * 4 + B * rows * E_pad * out_bytes)

    out = pl.pallas_call(
        kernel,
        out_shape=jax.ShapeDtypeStruct((B, rows, E_pad), out_dtype),
        grid_spec=pltpu.PrefetchScalarGridSpec(
            num_scalar_prefetch=0,
            grid=(num_steps,),
            in_specs=[
                pl.BlockSpec((k, rows, P_pad), lambda g: (g, 0, 0)),   # patch rows
                pl.BlockSpec((P_pad, E_pad), lambda g: (0, 0)),        # weight (inv)
                pl.BlockSpec((rows, E_pad), lambda g: (0, 0)),         # pos+bias (inv)
                pl.BlockSpec((8, E_pad), lambda g: (0, 0)),            # gamma/beta (inv)
            ],
            out_specs=pl.BlockSpec((k, rows, E_pad), lambda g: (g, 0, 0)),
        ),
        compiler_params=pltpu.CompilerParams(
            dimension_semantics=("parallel",)),
        cost_estimate=pl.CostEstimate(flops=flops, transcendentals=B * rows,
                                      bytes_accessed=bytes_accessed),
    )(patches, w_p, posb, params)

    if keep_padding:
        return out               # (B, N+1, E_pad); lanes E..E_pad are exact zeros
    return out[:, :, :E]         # extra HBM pass; prefer keep_padding=True downstream


def embed_layer_ref(x, w, b, cls_token, pos_embedding, gamma, beta, patch_size,
                    matmul_dtype=jnp.float32, eps=1e-5):
    """Pure-JAX reference mirroring the PyTorch EmbedLayer forward (eval mode)."""
    B, C, H, W = x.shape
    p = patch_size
    Hp, Wp = H // p, W // p
    N = Hp * Wp
    P = C * p * p
    patches = (x.reshape(B, C, Hp, p, Wp, p)
                 .transpose(0, 2, 4, 1, 3, 5)
                 .reshape(B, N, P))
    h = jnp.dot(patches.astype(matmul_dtype), w.astype(matmul_dtype),
                preferred_element_type=jnp.float32) + b[None, None, :]
    cls = jnp.broadcast_to(cls_token.reshape(1, 1, -1), (B, 1, h.shape[-1]))
    seq = jnp.concatenate([cls, h], axis=1) + pos_embedding
    mean = seq.mean(-1, keepdims=True)
    var = ((seq - mean) ** 2).mean(-1, keepdims=True)
    return (seq - mean) * jax.lax.rsqrt(var + eps) * gamma + beta


if __name__ == "__main__":
    # Small ViT-ish config: B=2, C=4, 16x16 images, 4x4 patches, embed_dim=32.
    B, C, H, W = 2, 4, 16, 16
    patch_size = 4
    embed_dim = 32
    num_patches = (H // patch_size) * (W // patch_size)      # 16
    patch_dim = C * patch_size * patch_size                  # 64

    key = jax.random.PRNGKey(0)
    kx, kw, kb, kc, kp, kg, kbt = jax.random.split(key, 7)

    x = jax.random.normal(kx, (B, C, H, W), dtype=jnp.float32)
    w = jax.random.normal(kw, (patch_dim, embed_dim), dtype=jnp.float32) * 0.05
    b = jax.random.normal(kb, (embed_dim,), dtype=jnp.float32) * 0.05
    cls_token = jax.random.normal(kc, (1, 1, embed_dim), dtype=jnp.float32) * 0.02
    pos_embedding = jax.random.normal(
        kp, (1, num_patches + 1, embed_dim), dtype=jnp.float32) * 0.02
    gamma = 1.0 + 0.01 * jax.random.normal(kg, (embed_dim,), dtype=jnp.float32)
    beta = 0.01 * jax.random.normal(kbt, (embed_dim,), dtype=jnp.float32)

    out_pad = embed_layer(x, w, b, cls_token, pos_embedding, gamma, beta,
                          patch_size, keep_padding=True)
    out_pad = jax.block_until_ready(out_pad)

    E_pad = out_pad.shape[-1]
    out = out_pad[..., :embed_dim]

    # Reference with the same bf16 matmul (tight tolerance)...
    ref_bf16 = embed_layer_ref(x, w, b, cls_token, pos_embedding, gamma, beta,
                               patch_size, matmul_dtype=jnp.bfloat16)
    # ...and the fully-f32 reference (loose tolerance for the bf16 matmul inputs).
    ref_f32 = embed_layer_ref(x, w, b, cls_token, pos_embedding, gamma, beta,
                              patch_size, matmul_dtype=jnp.float32)

    assert out_pad.shape == (B, num_patches + 1, E_pad)
    if E_pad > embed_dim:
        assert bool(jnp.all(out_pad[..., embed_dim:] == 0.0))   # padded lanes exact 0
    assert jnp.allclose(out, ref_bf16, atol=2e-3, rtol=2e-3)
    assert jnp.allclose(out, ref_f32, atol=3e-2, rtol=3e-2)

    print("KERNEL_OK")
</pallas_src>

<mosaic_0001>
module attributes {stable_mosaic.version = 11 : i64} {
  func.func @kernel(%arg0: i32, %arg1: memref<1x17x128xbf16, #tpu.memory_space<vmem>>, %arg2: memref<128x128xbf16, #tpu.memory_space<vmem>>, %arg3: memref<17x128xf32, #tpu.memory_space<vmem>>, %arg4: memref<8x128xf32, #tpu.memory_space<vmem>>, %arg5: memref<1x17x128xf32, #tpu.memory_space<vmem>>) attributes {dimension_semantics = [#tpu.dimension_semantics<parallel>], iteration_bounds = array<i64: 2>, scalar_prefetch = 0 : i64, scratch_operands = 0 : i64, tpu.core_type = #tpu.core_type<tc>, window_params = [{transform_indices = @transform_0, window_bounds = array<i64: 1, 17, 128>}, {pipeline_mode = #tpu.pipeline_mode<synchronous>, transform_indices = @transform_1, window_bounds = array<i64: 128, 128>}, {pipeline_mode = #tpu.pipeline_mode<synchronous>, transform_indices = @transform_2, window_bounds = array<i64: 17, 128>}, {pipeline_mode = #tpu.pipeline_mode<synchronous>, transform_indices = @transform_3, window_bounds = array<i64: 8, 128>}, {transform_indices = @transform_4, window_bounds = array<i64: 1, 17, 128>}]} {
    %c0 = arith.constant 0 : index
    %c0_0 = arith.constant 0 : index
    %0 = vector.load %arg2[%c0, %c0_0] : memref<128x128xbf16, #tpu.memory_space<vmem>>, vector<128x128xbf16>
    %c0_1 = arith.constant 0 : index
    %c0_2 = arith.constant 0 : index
    %1 = vector.load %arg3[%c0_1, %c0_2] : memref<17x128xf32, #tpu.memory_space<vmem>>, vector<17x128xf32>
    %c0_3 = arith.constant 0 : index
    %c0_4 = arith.constant 0 : index
    %2 = vector.load %arg4[%c0_3, %c0_4] : memref<8x128xf32, #tpu.memory_space<vmem>>, vector<1x128xf32>
    %c1 = arith.constant 1 : index
    %c0_5 = arith.constant 0 : index
    %3 = vector.load %arg4[%c1, %c0_5] : memref<8x128xf32, #tpu.memory_space<vmem>>, vector<1x128xf32>
    %c0_6 = arith.constant 0 : index
    %c0_7 = arith.constant 0 : index
    %c0_8 = arith.constant 0 : index
    %4 = vector.load %arg1[%c0_6, %c0_7, %c0_8] : memref<1x17x128xbf16, #tpu.memory_space<vmem>>, vector<1x17x128xbf16>
    %5 = vector.shape_cast %4 : vector<1x17x128xbf16> to vector<17x128xbf16>
    %cst = arith.constant dense<0.000000e+00> : vector<17x128xf32>
    %6 = tpu.matmul %5, %0, %cst {dimension_numbers = #tpu.dot_dimension_numbers<[1], [0], [0], [1], [0, 0, 1, 1], [], []>} : vector<17x128xbf16>, vector<128x128xbf16>, vector<17x128xf32> -> vector<17x128xf32>
    %7 = arith.addf %6, %1 : vector<17x128xf32>
    %cst_9 = arith.constant dense<0.000000e+00> : vector<17xf32>
    %8 = vector.multi_reduction <add>, %7, %cst_9 [1] : vector<17x128xf32> to vector<17xf32>
    %9 = vector.shape_cast %8 : vector<17xf32> to vector<17x1xf32>
    %cst_10 = arith.constant 3.125000e-02 : f32
    %10 = vector.broadcast %cst_10 : f32 to vector<17x1xf32>
    %11 = arith.mulf %9, %10 : vector<17x1xf32>
    %12 = vector.broadcast %11 : vector<17x1xf32> to vector<17x128xf32>
    %13 = arith.subf %7, %12 : vector<17x128xf32>
    %14 = arith.mulf %13, %13 : vector<17x128xf32>
    %cst_11 = arith.constant dense<0.000000e+00> : vector<17xf32>
    %15 = vector.multi_reduction <add>, %14, %cst_11 [1] : vector<17x128xf32> to vector<17xf32>
    %16 = vector.shape_cast %15 : vector<17xf32> to vector<17x1xf32>
    %17 = arith.mulf %11, %11 : vector<17x1xf32>
    %cst_12 = arith.constant 9.600000e+01 : f32
    %18 = vector.broadcast %cst_12 : f32 to vector<17x1xf32>
    %19 = arith.mulf %18, %17 : vector<17x1xf32>
    %20 = arith.subf %16, %19 : vector<17x1xf32>
    %cst_13 = arith.constant 3.125000e-02 : f32
    %21 = vector.broadcast %cst_13 : f32 to vector<17x1xf32>
    %22 = arith.mulf %20, %21 : vector<17x1xf32>
    %cst_14 = arith.constant 9.99999974E-6 : f32
    %23 = vector.broadcast %cst_14 : f32 to vector<17x1xf32>
    %24 = arith.addf %22, %23 : vector<17x1xf32>
    %25 = math.rsqrt %24 : vector<17x1xf32>
    %26 = vector.broadcast %25 : vector<17x1xf32> to vector<17x128xf32>
    %27 = arith.mulf %13, %26 : vector<17x128xf32>
    %28 = vector.broadcast %2 : vector<1x128xf32> to vector<17x128xf32>
    %29 = arith.mulf %27, %28 : vector<17x128xf32>
    %30 = vector.broadcast %3 : vector<1x128xf32> to vector<17x128xf32>
    %31 = arith.addf %29, %30 : vector<17x128xf32>
    %c0_15 = arith.constant 0 : index
    %c0_16 = arith.constant 0 : index
    %c0_17 = arith.constant 0 : index
    %32 = vector.load %arg5[%c0_15, %c0_16, %c0_17] : memref<1x17x128xf32, #tpu.memory_space<vmem>>, vector<1x17x128xf32>
    %33 = vector.shape_cast %32 : vector<1x17x128xf32> to vector<17x128xf32>
    %34 = vector.shape_cast %31 : vector<17x128xf32> to vector<1x17x128xf32>
    tpu.vector_store %arg5[%c0_15, %c0_16, %c0_17], %34 {strides = array<i32>} : memref<1x17x128xf32, #tpu.memory_space<vmem>>, vector<1x17x128xf32>,
    return
  }
  func.func @transform_0(%arg0: i32) -> (i32, i32, i32) {
    %c0_i32 = arith.constant 0 : i32
    %c0_i32_0 = arith.constant 0 : i32
    %c0_i32_1 = arith.constant 0 : i32
    return %arg0, %c0_i32, %c0_i32_0 : i32, i32, i32
  }
  func.func @transform_1(%arg0: i32) -> (i32, i32) {
    %c0_i32 = arith.constant 0 : i32
    %c0_i32_0 = arith.constant 0 : i32
    %c0_i32_1 = arith.constant 0 : i32
    return %c0_i32, %c0_i32_0 : i32, i32
  }
  func.func @transform_2(%arg0: i32) -> (i32, i32) {
    %c0_i32 = arith.constant 0 : i32
    %c0_i32_0 = arith.constant 0 : i32
    %c0_i32_1 = arith.constant 0 : i32
    return %c0_i32, %c0_i32_0 : i32, i32
  }
  func.func @transform_3(%arg0: i32) -> (i32, i32) {
    %c0_i32 = arith.constant 0 : i32
    %c0_i32_0 = arith.constant 0 : i32
    %c0_i32_1 = arith.constant 0 : i32
    return %c0_i32, %c0_i32_0 : i32, i32
  }
  func.func @transform_4(%arg0: i32) -> (i32, i32, i32) {
    %c0_i32 = arith.constant 0 : i32
    %c0_i32_0 = arith.constant 0 : i32
    %c0_i32_1 = arith.constant 0 : i32
    return %arg0, %c0_i32, %c0_i32_0 : i32, i32, i32
  }
}

</mosaic_0001>

<llo_original>
// kernel: tpu_custom_call.1
$region0: #{tpu_custom_call.1}
  #allocation0 [shape = 'u32[]', space=smem, size = 0x4, offset = 0x4, fixed_abs, tag = 'smem constant byte address 0x4 - core index']
  #allocation1 [shape = 'u32[144,128]{1,0:T(1,128)}', space=vmem, size = 0x12000, scoped, tag = 'internal scratch']
  %s0 = inlined_call_operand.vmem [shape: bf16[2,17,128], index: 0, kind: input, shape index: {}]
  %s1 = inlined_call_operand.hbm [shape: bf16[128,128], index: 1, kind: input, shape index: {}]
  %s2 = inlined_call_operand.vmem [shape: f32[17,128], index: 2, kind: input, shape index: {}]
  %s3 = inlined_call_operand.vmem [shape: f32[8,128], index: 3, kind: input, shape index: {}]
  %s4 = inlined_call_operand.vmem [shape: f32[2,17,128], index: 4, kind: output, shape index: {}]
  %s5 = sld [smem:[#allocation0]]
  $region53: #{tpu_custom_call.1} parent=0
    _
  %s7 = ssub.s32 1, %s5
  %s8 = scalar_select 0, %s7, %s5
  $region1: #{tpu_custom_call.1} parent=0
    #allocation2 [shape = 'u8[32768]{0}', space=vmem, size = 0x8000, scoped, tag = 'input window, operand 1, single buffered']
    #allocation3 [shape = 's32[2]{0}', space=sflag, size = 0x8, scoped, tag = 'scoped memory for tpu_custom_call.1']
    %9 = vsyncpa [#allocation3], 0
    loop: start=0, step=1, limit=4
    $region2: #{tpu_custom_call.1} parent=1 // loop_pre_header
      _
    $region3: #{tpu_custom_call.1} parent=1 // loop_header
      %s11 = sphi 0, %s15
      %p12 = scmp.ge.s32.totalorder %s11, 4
      %s21 = sphi 0, %s23
      %s24 = sphi 0, %s21
      %s25 = sphi 0, %s24
      %s41 = sphi 0, %s25
      %s45 = sphi 0, %s45
      %s47 = sphi 0, %s45
      %s48 = sphi 0, %s47
      %s62 = sphi 0, %s48
      %s66 = sphi 0, %s66
      %s68 = sphi 0, %s66
      %s69 = sphi 0, %s68
      %s83 = sphi 0, %s69
      %s87 = sphi 0, %s87
      %s89 = sphi 0, %s87
      %s90 = sphi 0, %s89
      %s104 = sphi 0, %s90
      %s110 = sphi 0, %s112
      %s113 = sphi 0, %s110
      %s114 = sphi 0, %s113
      %s130 = sphi 0, %s114
    $region4: #{tpu_custom_call.1} parent=1 // loop_header_branch
      %14 = sbr.rel (%p12) target = $region8
    $region5: #{tpu_custom_call.1} parent=1 // loop_body
      %s16 = ssub.s32 %s11, 1
      %s17 = ssub.s32 %s11, 2
      %s18 = sadd.s32 %s11, 1
      %s19 = ssub.s32 %s11, %s18
      %p20 = scmp.eq.s32.totalorder %s19, 0
      %s22 = sadd.s32 %s21, 1
      %s23 = scalar_select %p20, %s21, %s22
      %p26 = pneg %p20
      %p27 = scmp.eq.s32.totalorder %s11, 1
      %p28 = por %p26, %p27
      %p29 = scmp.ne.s32.totalorder %s21, %s24
      %p30 = scmp.eq.s32.totalorder %s11, 0
      %p31 = por %p29, %p30
      %p32 = scmp.ne.s32.totalorder %s21, %s24
      %p33 = scmp.eq.s32.totalorder %s16, 1
      %p34 = por %p32, %p33
      %p35 = scmp.ne.s32.totalorder %s24, %s25
      %p36 = scmp.eq.s32.totalorder %s16, 0
      %p37 = por %p35, %p36
      %p38 = scmp.ne.s32.totalorder %s24, %s25
      %p39 = scmp.eq.s32.totalorder %s17, 1
      %p40 = por %p38, %p39
      %p42 = scmp.ne.s32.totalorder %s25, %s41
      %p43 = scmp.eq.s32.totalorder %s17, 0
      %p44 = por %p42, %p43
      %s46 = sadd.s32 %s45, 1
      %p49 = scmp.eq.s32.totalorder %s11, 1
      %p50 = scmp.ne.s32.totalorder %s45, %s47
      %p51 = scmp.eq.s32.totalorder %s11, 0
      %p52 = por %p50, %p51
      %p53 = scmp.ne.s32.totalorder %s45, %s47
      %p54 = scmp.eq.s32.totalorder %s16, 1
      %p55 = por %p53, %p54
      %p56 = scmp.ne.s32.totalorder %s47, %s48
      %p57 = scmp.eq.s32.totalorder %s16, 0
      %p58 = por %p56, %p57
      %p59 = scmp.ne.s32.totalorder %s47, %s48
      %p60 = scmp.eq.s32.totalorder %s17, 1
      %p61 = por %p59, %p60
      %p63 = scmp.ne.s32.totalorder %s48, %s62
      %p64 = scmp.eq.s32.totalorder %s17, 0
      %p65 = por %p63, %p64
      %s67 = sadd.s32 %s66, 1
      %p70 = scmp.eq.s32.totalorder %s11, 1
      %p71 = scmp.ne.s32.totalorder %s66, %s68
      %p72 = scmp.eq.s32.totalorder %s11, 0
      %p73 = por %p71, %p72
      %p74 = scmp.ne.s32.totalorder %s66, %s68
      %p75 = scmp.eq.s32.totalorder %s16, 1
      %p76 = por %p74, %p75
      %p77 = scmp.ne.s32.totalorder %s68, %s69
      %p78 = scmp.eq.s32.totalorder %s16, 0
      %p79 = por %p77, %p78
      %p80 = scmp.ne.s32.totalorder %s68, %s69
      %p81 = scmp.eq.s32.totalorder %s17, 1
      %p82 = por %p80, %p81
      %p84 = scmp.ne.s32.totalorder %s69, %s83
      %p85 = scmp.eq.s32.totalorder %s17, 0
      %p86 = por %p84, %p85
      %s88 = sadd.s32 %s87, 1
      %p91 = scmp.eq.s32.totalorder %s11, 1
      %p92 = scmp.ne.s32.totalorder %s87, %s89
      %p93 = scmp.eq.s32.totalorder %s11, 0
      %p94 = por %p92, %p93
      %p95 = scmp.ne.s32.totalorder %s87, %s89
      %p96 = scmp.eq.s32.totalorder %s16, 1
      %p97 = por %p95, %p96
      %p98 = scmp.ne.s32.totalorder %s89, %s90
      %p99 = scmp.eq.s32.totalorder %s16, 0
      %p100 = por %p98, %p99
      %p101 = scmp.ne.s32.totalorder %s89, %s90
      %p102 = scmp.eq.s32.totalorder %s17, 1
      %p103 = por %p101, %p102
      %p105 = scmp.ne.s32.totalorder %s90, %s104
      %p106 = scmp.eq.s32.totalorder %s17, 0
      %p107 = por %p105, %p106
      %s108 = ssub.s32 %s11, %s18
      %p109 = scmp.eq.s32.totalorder %s108, 0
      %s111 = sadd.s32 %s110, 1
      %s112 = scalar_select %p109, %s110, %s111
      %p115 = pneg %p109
      %p116 = scmp.eq.s32.totalorder %s11, 1
      %p117 = por %p115, %p116
      %p118 = scmp.ne.s32.totalorder %s110, %s113
      %p119 = scmp.eq.s32.totalorder %s11, 0
      %p120 = por %p118, %p119
      %p121 = scmp.ne.s32.totalorder %s110, %s113
      %p122 = scmp.eq.s32.totalorder %s16, 1
      %p123 = por %p121, %p122
      %p124 = scmp.ne.s32.totalorder %s113, %s114
      %p125 = scmp.eq.s32.totalorder %s16, 0
      %p126 = por %p124, %p125
      %p127 = scmp.ne.s32.totalorder %s113, %s114
      %p128 = scmp.eq.s32.totalorder %s17, 1
      %p129 = por %p127, %p128
      %p131 = scmp.ne.s32.totalorder %s114, %s130
      %p132 = scmp.eq.s32.totalorder %s17, 0
      %p133 = por %p131, %p132
      %p134 = scmp.le.s32.totalorder 1, %s11
      %p135 = scmp.lt.s32.totalorder %s11, 3
      %p136 = pnand %p134, %p135
      %p137 = pneg %p136
      // Predicated region
      $region9: #{tpu_custom_call.1} parent=5 // pred_check
        _
      $region10: #{tpu_custom_call.1} parent=5 // pred_check_branch
        %139 = sbr.rel (%p136) target = $region12
      $region11: #{tpu_custom_call.1} parent=5 // pred_region
        %s140 = ssub.s32 %s11, 1
        // Predicated region
        $region13: #{tpu_custom_call.1} parent=11 // pred_check
          %p141 = pneg %p58
        $region14: #{tpu_custom_call.1} parent=11 // pred_check_branch
          %143 = sbr.rel (%p141) target = $region16
        $region15: #{tpu_custom_call.1} parent=11 // pred_region
          %s145 = ssub.s32 1024, 1024
          %146 = vsyncadd [#allocation3], %s145
          %s147 = sshll.u32 [#allocation2], 4
          %s148 = int_to_ptr.vmem [resolvable:$true] %s147
          %153 = dma.hbm_to_vmem [thread:$0]  %s1, 1024, %s148, [#allocation3], 64, 64, 4
        $region16: #{tpu_custom_call.1} parent=11 // pred_fallthru
          _
        // Predicated region
        $region17: #{tpu_custom_call.1} parent=11 // pred_check
          %p154 = pneg %p79
        $region18: #{tpu_custom_call.1} parent=11 // pred_check_branch
          %156 = sbr.rel (%p154) target = $region20
        $region19: #{tpu_custom_call.1} parent=11 // pred_region
          _
        $region20: #{tpu_custom_call.1} parent=11 // pred_fallthru
          _
        // Predicated region
        $region21: #{tpu_custom_call.1} parent=11 // pred_check
          %p157 = pneg %p100
        $region22: #{tpu_custom_call.1} parent=11 // pred_check_branch
          %159 = sbr.rel (%p157) target = $region24
        $region23: #{tpu_custom_call.1} parent=11 // pred_region
          _
        $region24: #{tpu_custom_call.1} parent=11 // pred_fallthru
          _
      $region12: #{tpu_custom_call.1} parent=5 // pred_fallthru
        _
      %p160 = scmp.lt.s32.totalorder %s11, 2
      // Predicated region
      $region25: #{tpu_custom_call.1} parent=5 // pred_check
        %p161 = pneg %p160
      $region26: #{tpu_custom_call.1} parent=5 // pred_check_branch
        %163 = sbr.rel (%p161) target = $region28
      $region27: #{tpu_custom_call.1} parent=5 // pred_region
        // Predicated region
        $region29: #{tpu_custom_call.1} parent=27 // pred_check
          %p164 = pneg %p31
        $region30: #{tpu_custom_call.1} parent=27 // pred_check_branch
          %166 = sbr.rel (%p164) target = $region32
        $region31: #{tpu_custom_call.1} parent=27 // pred_region
          %p167 = scmp.lt.s32.totalorder %s11, 1
          %s168 = scalar_select %p167, %s11, 1
          %s169 = smul.addr %s168, 3
          %s170 = smul.addr %s169, 4
          %s171 = scalar_lea.vmem %s0, %s170
        $region32: #{tpu_custom_call.1} parent=27 // pred_fallthru
          _
      $region28: #{tpu_custom_call.1} parent=5 // pred_fallthru
        _
      %p172 = scmp.le.s32.totalorder 1, %s11
      %p173 = scmp.lt.s32.totalorder %s11, 3
      %p174 = pnand %p172, %p173
      %p175 = pneg %p174
      // Predicated region
      $region33: #{tpu_custom_call.1} parent=5 // pred_check
        _
      $region34: #{tpu_custom_call.1} parent=5 // pred_check_branch
        %177 = sbr.rel (%p174) target = $region36
      $region35: #{tpu_custom_call.1} parent=5 // pred_region
        %s178 = ssub.s32 %s11, 1
        // Predicated region
        $region37: #{tpu_custom_call.1} parent=35 // pred_check
          %p179 = pneg %p58
        $region38: #{tpu_custom_call.1} parent=35 // pred_check_branch
          %181 = sbr.rel (%p179) target = $region40
        $region39: #{tpu_custom_call.1} parent=35 // pred_region
          %182 = dma.done [#allocation3], 1024
        $region40: #{tpu_custom_call.1} parent=35 // pred_fallthru
          _
        %p183 = scmp.lt.s32.totalorder %s16, 1
        %s184 = scalar_select %p183, %s16, 1
        %s185 = smul.addr %s184, 3
        %s186 = smul.addr %s185, 4
        %s187 = scalar_lea.vmem %s0, %s186
        %p188 = pneg %p37
        %p189 = pneg %p34
        %p190 = pneg %p58
        %p191 = pneg %p55
        %p192 = pneg %p79
        %p193 = pneg %p76
        %p194 = pneg %p100
        %p195 = pneg %p97
        %p196 = pneg %p126
        %p197 = pneg %p123
        %p198 = scmp.lt.s32.totalorder %s16, 1
        %s199 = scalar_select %p198, %s16, 1
        %s200 = smul.addr %s199, 3
        %s201 = smul.addr %s200, 8
        %s202 = scalar_lea.vmem %s4, %s201
        %p203 = scmp.lt.s32.totalorder %s16, 1
        %s204 = scalar_select %p203, %s16, 1
        %s205 = smul.addr %s204, 3
        %s206 = smul.addr %s205, 4
        %s207 = scalar_lea.vmem %s0, %s206
        %p208 = scmp.lt.s32.totalorder %s16, 1
        %s209 = scalar_select %p208, %s16, 1
        %s210 = smul.addr %s209, 3
        %s211 = smul.addr %s210, 8
        %s212 = scalar_lea.vmem %s4, %s211
        %v214 = vld [vmem:[#allocation2] sm:$0xf]
        %v215 = vld [vmem:[#allocation2 + $0x4] sm:$0xf]
        %v216 = vld [vmem:[#allocation2 + $0x8] sm:$0xf]
        %v217 = vld [vmem:[#allocation2 + $0xc] sm:$0xf]
        %v218 = vld [vmem:[#allocation2 + $0x10] sm:$0xf]
        %v219 = vld [vmem:[#allocation2 + $0x14] sm:$0xf]
        %v220 = vld [vmem:[#allocation2 + $0x18] sm:$0xf]
        %v221 = vld [vmem:[#allocation2 + $0x1c] sm:$0xf]
        %v222 = vld [vmem:[#allocation2 + $0x20] sm:$0xf]
        %v223 = vld [vmem:[#allocation2 + $0x24] sm:$0xf]
        %v224 = vld [vmem:[#allocation2 + $0x28] sm:$0xf]
        %v225 = vld [vmem:[#allocation2 + $0x2c] sm:$0xf]
        %v226 = vld [vmem:[#allocation2 + $0x30] sm:$0xf]
        %v227 = vld [vmem:[#allocation2 + $0x34] sm:$0xf]
        %v228 = vld [vmem:[#allocation2 + $0x38] sm:$0xf]
        %v229 = vld [vmem:[#allocation2 + $0x3c] sm:$0xf]
        %v230 = vld [vmem:[%s2] sm:$0xff]
        %v231 = vld [vmem:[%s2 + $0x8] sm:$0xff]
        %v232 = vld [vmem:[%s2 + $0x10] sm:$0x1]
        %v233 = vld [vmem:[%s3] sm:$0x1]
        %v234 = vld [vmem:[%s3 + $0x1] sm:$0x1]
        %v235 = vld [vmem:[%s207] sm:$0xf]
        %v236 = vld [vmem:[%s207 + $0x4] sm:$0xf]
        %v237 = vld [vmem:[%s207 + $0x8] sm:$0x1]
        %v241 = vunpack.c.l.b16 %v235
        %v242 = vunpack.c.l.b16 %v236
        %v243 = vunpack.c.l.b16 %v237
        %v244 = vpack.c.b16 %v242, %v241
        %v245 = vpack.c.b16 %v243, %v243
        %v264 = vunpack.c.l.b16 %v214
        %v265 = vunpack.c.l.b16 %v215
        %v266 = vunpack.c.l.b16 %v216
        %v267 = vunpack.c.l.b16 %v217
        %v268 = vunpack.c.l.b16 %v218
        %v269 = vunpack.c.l.b16 %v219
        %v270 = vunpack.c.l.b16 %v220
        %v271 = vunpack.c.l.b16 %v221
        %v272 = vunpack.c.l.b16 %v222
        %v273 = vunpack.c.l.b16 %v223
        %v274 = vunpack.c.l.b16 %v224
        %v275 = vunpack.c.l.b16 %v225
        %v276 = vunpack.c.l.b16 %v226
        %v277 = vunpack.c.l.b16 %v227
        %v278 = vunpack.c.l.b16 %v228
        %v279 = vunpack.c.l.b16 %v229
        %v280 = vpack.c.b16 %v265, %v264
        %v281 = vpack.c.b16 %v267, %v266
        %v282 = vpack.c.b16 %v269, %v268
        %v283 = vpack.c.b16 %v271, %v270
        %v284 = vpack.c.b16 %v273, %v272
        %v285 = vpack.c.b16 %v275, %v274
        %v286 = vpack.c.b16 %v277, %v276
        %v287 = vpack.c.b16 %v279, %v278
        %296 = vmatprep.subr.bf16.mxu0 0
        %297 = vmatpush1.bf16.msra.mxu0 %v280
        %298 = vmatprep.subr.bf16.mxu0 0
        %299 = vmatpush1.bf16.msra.mxu0 %v281
        %300 = vmatprep.subr.bf16.mxu0 0
        %301 = vmatpush1.bf16.msra.mxu0 %v282
        %302 = vmatprep.subr.bf16.mxu0 0
        %303 = vmatpush1.bf16.msra.mxu0 %v283
        %304 = vmatprep.subr.bf16.mxu0 0
        %305 = vmatpush1.bf16.msra.mxu0 %v284
        %306 = vmatprep.subr.bf16.mxu0 0
        %307 = vmatpush1.bf16.msra.mxu0 %v285
        %308 = vmatprep.subr.bf16.mxu0 0
        %309 = vmatpush1.bf16.msra.mxu0 %v286
        %310 = vmatprep.subr.bf16.mxu0 0
        %311 = vmatpush1.bf16.msra.mxu0 %v287
        %312 = vmatprep.subr.bf16.mxu0 0
        %313 = vmatpush1.bf16.msra.mxu0 0
        %314 = vmatprep.subr.bf16.mxu0 0
        %315 = vmatpush1.bf16.msra.mxu0 0
        %316 = vmatprep.subr.bf16.mxu0 0
        %317 = vmatpush1.bf16.msra.mxu0 0
        %318 = vmatprep.subr.bf16.mxu0 0
        %319 = vmatpush1.bf16.msra.mxu0 0
        %320 = vmatprep.subr.bf16.mxu0 0
        %321 = vmatpush1.bf16.msra.mxu0 0
        %322 = vmatprep.subr.bf16.mxu0 0
        %323 = vmatpush1.bf16.msra.mxu0 0
        %324 = vmatprep.subr.bf16.mxu0 0
        %325 = vmatpush1.bf16.msra.mxu0 0
        %326 = vmatprep.subr.bf16.mxu0 0
        %327 = vmatpush1.bf16.msra.mxu0 0
        %328 = vmatprep.mubr.bf16.mxu0 0
        %329 = vmatmul.mubr.bf16.gmra.mrb[0].mxu0 %v244
        %v330 = vpop.f32.mrb[0].mxu0
        %v331 = vadd.f32 %v230, %v330
        %v332 = vpop.f32.mrb[0].mxu0
        %v333 = vpop.f32.mrb[0].mxu0
        %v334 = vadd.f32 %v231, %v333
        %v335 = vpop.f32.mrb[0].mxu0
        %336 = vmatprep.mubr.bf16.mxu0 0
        %337 = vmatmul.mubr.bf16.gmra.mrb[0].mxu0 %v245
        %v338 = vpop.f32.mrb[0].mxu0
        %v339 = vadd.f32 %v232, %v338
        %v340 = vpop.f32.mrb[0].mxu0
        %v341 = vpop.f32.mrb[0].mxu0
        %v342 = vpop.f32.mrb[0].mxu0
        %343 = vdwg.mxu0
        %344 = vadd.xlane.f32.xlu0 %v331
        %v345 = vpop.xlane.xlu0 %344
        %346 = vadd.xlane.f32.xlu0 %v334
        %v347 = vpop.xlane.xlu0 %346
        %vm348 = vcmask 1040384
        %v349 = vsel %vm348, %v339, 0.0
        %350 = vadd.xlane.f32.xlu0 %v349
        %v351 = vpop.xlane.xlu0 %350
        %v352 = vmul.f32 %v345, 0.03125
        %v353 = vmul.f32 %v347, 0.03125
        %v354 = vmul.f32 %v351, 0.03125
        %v355 = vsub.f32 %v331, %v352
        %v356 = vsub.f32 %v334, %v353
        %v357 = vsub.f32 %v339, %v354
        %v358 = vmul.f32 %v355, %v355
        %v359 = vmul.f32 %v356, %v356
        %v360 = vmul.f32 %v357, %v357
        %361 = vadd.xlane.f32.xlu0 %v358
        %v362 = vpop.xlane.xlu0 %361
        %363 = vadd.xlane.f32.xlu0 %v359
        %v364 = vpop.xlane.xlu0 %363
        %v365 = vsel %vm348, %v360, 0.0
        %366 = vadd.xlane.f32.xlu0 %v365
        %v367 = vpop.xlane.xlu0 %366
        %v368 = vmul.f32 %v352, %v352
        %v369 = vmul.f32 %v353, %v353
        %v370 = vmul.f32 %v354, %v354
        %v371 = vmul.f32 %v368, 96.0
        %v372 = vmul.f32 %v369, 96.0
        %v373 = vmul.f32 %v370, 96.0
        %v374 = vsub.f32 %v362, %v371
        %v375 = vsub.f32 %v364, %v372
        %v376 = vsub.f32 %v367, %v373
        %v377 = vmul.f32 %v374, 0.03125
        %v378 = vmul.f32 %v375, 0.03125
        %v379 = vmul.f32 %v376, 0.03125
        %v380 = vadd.f32 %v377, 1e-05
        %v381 = vadd.f32 %v378, 1e-05
        %v382 = vadd.f32 %v379, 1e-05
        %v383 = vrsqrt.pop %v380
        %v384 = vrsqrt.pop %v381
        %v385 = vrsqrt.pop %v382
        %v386 = vmul.f32 %v355, %v383
        %v387 = vmul.f32 %v356, %v384
        %v388 = vmul.f32 %v357, %v385
        %v389 = vlaneseq
        %v390 = vshrl.u32 %v389, 7
        %v391 = vsub.s32 0, %v390
        %v392 = vrot.slane %v233, %v391
        %v393 = vmul.f32 %v386, %v392
        %v394 = vmul.f32 %v387, %v392
        %v395 = vmul.f32 %v388, %v392
        %v396 = vlaneseq
        %v397 = vshrl.u32 %v396, 7
        %v398 = vsub.s32 0, %v397
        %v399 = vrot.slane %v234, %v398
        %v400 = vadd.f32 %v393, %v399
        %v401 = vadd.f32 %v394, %v399
        %v402 = vadd.f32 %v395, %v399
        %403 = vst [vmem:[%s212] sm:$0xff] %v400
        %404 = vst [vmem:[%s212 + $0x8] sm:$0xff] %v401
        %405 = vst [vmem:[%s212 + $0x10] sm:$0x1] %v402
        %p406 = scmp.lt.s32.totalorder %s16, 1
        %s407 = scalar_select %p406, %s16, 1
        %s408 = smul.addr %s407, 3
        %s409 = smul.addr %s408, 8
        %s410 = scalar_lea.vmem %s4, %s409
        // Predicated region
        $region41: #{tpu_custom_call.1} parent=35 // pred_check
          %p411 = pneg %p123
        $region42: #{tpu_custom_call.1} parent=35 // pred_check_branch
          %413 = sbr.rel (%p411) target = $region44
        $region43: #{tpu_custom_call.1} parent=35 // pred_region
          _
        $region44: #{tpu_custom_call.1} parent=35 // pred_fallthru
          _
      $region36: #{tpu_custom_call.1} parent=5 // pred_fallthru
        _
      %p414 = scmp.le.s32.totalorder 2, %s11
      // Predicated region
      $region45: #{tpu_custom_call.1} parent=5 // pred_check
        %p415 = pneg %p414
      $region46: #{tpu_custom_call.1} parent=5 // pred_check_branch
        %417 = sbr.rel (%p415) target = $region48
      $region47: #{tpu_custom_call.1} parent=5 // pred_region
        %s418 = ssub.s32 %s11, 2
        // Predicated region
        $region49: #{tpu_custom_call.1} parent=47 // pred_check
          %p419 = pneg %p129
        $region50: #{tpu_custom_call.1} parent=47 // pred_check_branch
          %421 = sbr.rel (%p419) target = $region52
        $region51: #{tpu_custom_call.1} parent=47 // pred_region
          %p422 = scmp.lt.s32.totalorder %s17, 1
          %s423 = scalar_select %p422, %s17, 1
          %s424 = smul.addr %s423, 3
          %s425 = smul.addr %s424, 8
          %s426 = scalar_lea.vmem %s4, %s425
        $region52: #{tpu_custom_call.1} parent=47 // pred_fallthru
          _
      $region48: #{tpu_custom_call.1} parent=5 // pred_fallthru
        _
    $region6: #{tpu_custom_call.1} parent=1 // loop_footer
      %s15 = sadd.s32 1, %s11
    $region7: #{tpu_custom_call.1} parent=1 // loop_footer_branch
      %10 = sbr.rel target = $region3
    $region8: #{tpu_custom_call.1} parent=1 // loop_exit
      _
    %427 = vsyncpa [#allocation3], 1
    %s428 = scalar_lea.sflag [#allocation3], 1
    %429 = vsyncpa %s428, 1

</llo_original>
